<compile_context>
chip_gen: v5e
topology: v5e:2x2
jax: 0.10.0
libtpu: 0.0.40
codegen_flags: <defaults>
</compile_context>

<pallas_src>
import functools

import jax
import jax.numpy as jnp
from jax.experimental import pallas as pl
from jax.experimental.pallas import tpu as pltpu


def _ce_kernel(logits_ref, labels_ref, out_ref, acc_ref, *,
               n_rows, steps_per_split, inv_n):
    # logits_ref: (TN, C) native dtype; labels_ref: (TN, 1) int32
    s_idx = pl.program_id(0)      # batch split ("parallel", TC on v7x)
    i_idx = pl.program_id(1)      # sequential reduction step within the split

    @pl.when(i_idx == 0)
    def _():
        acc_ref[...] = jnp.zeros_like(acc_ref)

    x = logits_ref[...].astype(jnp.float32)            # in-kernel upcast only
    tn, c = x.shape
    labels = labels_ref[...]                           # (TN, 1) int32

    # numerically stable log-sum-exp per row
    m = jnp.max(x, axis=-1, keepdims=True)             # (TN, 1)
    z = x - m                                          # (TN, C)
    lse = jnp.log(jnp.sum(jnp.exp(z), axis=-1, keepdims=True))   # (TN, 1)

    # select-based true-class pick: (1, C) iota row broadcast against labels
    cls_ids = jax.lax.broadcasted_iota(jnp.int32, (1, c), 1)
    picked = jnp.sum(jnp.where(cls_ids == labels, z, 0.0),
                     axis=-1, keepdims=True)           # (TN, 1)

    # mask rows that fall past the end of the batch (ragged / overshoot tile)
    block_idx = s_idx * steps_per_split + i_idx
    row0 = block_idx * tn
    row_ids = row0 + jax.lax.broadcasted_iota(jnp.int32, (tn, 1), 0)
    valid = row_ids < n_rows

    acc_ref[...] += jnp.where(valid, lse - picked, 0.0)     # vector accumulate

    @pl.when(i_idx == steps_per_split - 1)
    def _():
        partial = jnp.sum(acc_ref[...]) * jnp.float32(inv_n)
        sub = jax.lax.broadcasted_iota(jnp.int32, (8, 128), 0)
        lane = jax.lax.broadcasted_iota(jnp.int32, (8, 128), 1)
        out_ref[...] = jnp.where((sub == 0) & (lane == 0), partial, 0.0)


def _vmem_capacity_bytes():
    try:
        cap = int(getattr(pltpu.get_tpu_info(), "vmem_capacity_bytes"))
        if cap > 0:
            return cap
    except Exception:
        pass
    return 64 * 1024 * 1024   # conservative: v7x per-TensorCore VMEM


def ce_loss(logits, labels, *, block_rows=None):
    """Mean cross-entropy over the batch in one pipelined Pallas kernel.

    logits: (N, C) float array (f32 or bf16 — kept in its native dtype)
    labels: (N,)   integer class indices in [0, C)
    """
    n, c = logits.shape
    labels2d = labels.astype(jnp.int32).reshape(n, 1)
    elem = jnp.dtype(logits.dtype).itemsize
    mib = 1024 * 1024

    cap = _vmem_capacity_bytes()
    budget = min(int(cap * 0.70), cap - 16 * mib)
    # VMEM bytes per tile row: double-buffered logits block, ~3 (TN, C) f32
    # temporaries (upcast / exp / select), lane-padded labels double buffer
    # and lane-padded (TN, 1) accumulator.
    per_row = 2 * c * elem + 3 * c * 4 + 3 * 128 * 4
    phys_rows = max(8, (budget // per_row) // 8 * 8)

    n_rounded = -(-n // 8) * 8
    if block_rows is None:
        # target ~4 MiB per logits buffer (>= measured HBM-roofline knee);
        # cap rows only for code-size sanity and by the physical VMEM budget.
        target_rows = max(8, ((4 * mib) // (c * elem)) // 8 * 8)
        tn = int(max(8, min(target_rows, phys_rows, n_rounded, 16384)))
    else:
        tn = int(max(8, min(-(-int(block_rows) // 8) * 8, phys_rows, n_rounded)))

    n_blocks = -(-n // tn)
    nsplit = 2 if n_blocks >= 2 else 1          # 2-way split feeds both v7x TCs
    steps = -(-n_blocks // nsplit)

    def block_map(s, i):
        # clamp the (at most one) overshoot step of an odd split back onto the
        # last valid block; its rows are masked out in-kernel anyway.
        return (jnp.minimum(s * steps + i, n_blocks - 1), 0)

    est = per_row * tn + 4 * mib
    vmem_limit = int(min(cap - 4 * mib, max(16 * mib, est)))

    kernel = functools.partial(_ce_kernel, n_rows=n, steps_per_split=steps,
                               inv_n=1.0 / n)

    partials = pl.pallas_call(
        kernel,
        out_shape=jax.ShapeDtypeStruct((nsplit * 8, 128), jnp.float32),
        grid=(nsplit, steps),
        in_specs=[
            pl.BlockSpec((tn, c), block_map),
            pl.BlockSpec((tn, 1), block_map),
        ],
        out_specs=pl.BlockSpec((8, 128), lambda s, i: (s, 0)),
        scratch_shapes=[pltpu.VMEM((tn, 1), jnp.float32)],
        compiler_params=pltpu.CompilerParams(
            dimension_semantics=("parallel", "arbitrary"),
            vmem_limit_bytes=vmem_limit,
        ),
    )(logits, labels2d)
    return jnp.sum(partials)


def _reference(logits, labels):
    # pure-JAX reference (matches torch.nn.CrossEntropyLoss default semantics)
    logp = jax.nn.log_softmax(logits.astype(jnp.float32), axis=-1)
    nll = -jnp.take_along_axis(logp, labels[:, None].astype(jnp.int32), axis=-1)[:, 0]
    return jnp.mean(nll)


if __name__ == "__main__":
    key = jax.random.PRNGKey(0)
    k1, k2, k3, k4, k5, k6 = jax.random.split(key, 6)

    # Case 1: small f32 batch (the module's typical use).
    N, C = 8, 32
    logits = jax.random.normal(k1, (N, C), dtype=jnp.float32)
    labels = jax.random.randint(k2, (N,), 0, C, dtype=jnp.int32)
    loss = ce_loss(logits, labels)
    jax.block_until_ready(loss)
    ref = _reference(logits, labels)
    assert jnp.allclose(loss, ref, atol=1e-5, rtol=1e-5), (loss, ref)

    # Case 2: bf16 logits, batch not a multiple of the tile — exercises the
    # pipelined grid, the 2-way split, the in-kernel ragged-row masking (no
    # host pad), the overshoot-step clamp and the global-N mean.
    N2, C2 = 20, 256
    logits2 = jax.random.normal(k3, (N2, C2), dtype=jnp.bfloat16)
    labels2 = jax.random.randint(k4, (N2,), 0, C2, dtype=jnp.int32)
    loss2 = ce_loss(logits2, labels2, block_rows=8)
    jax.block_until_ready(loss2)
    ref2 = _reference(logits2, labels2)
    assert jnp.allclose(loss2, ref2, atol=1e-4, rtol=1e-4), (loss2, ref2)

    # Case 3: batch smaller than the minimum tile (single ragged block).
    N3, C3 = 7, 16
    logits3 = jax.random.normal(k5, (N3, C3), dtype=jnp.float32)
    labels3 = jax.random.randint(k6, (N3,), 0, C3, dtype=jnp.int32)
    loss3 = ce_loss(logits3, labels3)
    jax.block_until_ready(loss3)
    ref3 = _reference(logits3, labels3)
    assert jnp.allclose(loss3, ref3, atol=1e-5, rtol=1e-5), (loss3, ref3)

    print("KERNEL_OK")
</pallas_src>

<mosaic_0001>
module attributes {stable_mosaic.version = 11 : i64} {
  func.func @_ce_kernel(%arg0: i32, %arg1: i32, %arg2: memref<8x32xf32, #tpu.memory_space<vmem>>, %arg3: memref<8x1xi32, #tpu.memory_space<vmem>>, %arg4: memref<8x128xf32, #tpu.memory_space<vmem>>, %arg5: memref<8x1xf32, #tpu.memory_space<vmem>>) attributes {dimension_semantics = [#tpu.dimension_semantics<parallel>, #tpu.dimension_semantics<arbitrary>], iteration_bounds = array<i64: 1, 1>, scalar_prefetch = 0 : i64, scratch_operands = 1 : i64, tpu.core_type = #tpu.core_type<tc>, window_params = [{transform_indices = @transform_0, window_bounds = array<i64: 8, 32>}, {transform_indices = @transform_1, window_bounds = array<i64: 8, 1>}, {transform_indices = @transform_2, window_bounds = array<i64: 8, 128>}]} {
    %c0_i32 = arith.constant 0 : i32
    %0 = arith.cmpi eq, %arg1, %c0_i32 : i32
    %1 = arith.extui %0 : i1 to i32
    %c0_i32_0 = arith.constant 0 : i32
    %2 = arith.cmpi ne, %1, %c0_i32_0 : i32
    scf.if %2 {
      %cst_15 = arith.constant 0.000000e+00 : f32
      %38 = vector.broadcast %cst_15 : f32 to vector<8x1xf32>
      %c0_16 = arith.constant 0 : index
      %c0_17 = arith.constant 0 : index
      %39 = vector.load %arg5[%c0_16, %c0_17] : memref<8x1xf32, #tpu.memory_space<vmem>>, vector<8x1xf32>
      tpu.vector_store %arg5[%c0_16, %c0_17], %38 {strides = array<i32>} : memref<8x1xf32, #tpu.memory_space<vmem>>, vector<8x1xf32>,
    } else {
    }
    %c0 = arith.constant 0 : index
    %c0_1 = arith.constant 0 : index
    %3 = vector.load %arg2[%c0, %c0_1] : memref<8x32xf32, #tpu.memory_space<vmem>>, vector<8x32xf32>
    %c0_2 = arith.constant 0 : index
    %c0_3 = arith.constant 0 : index
    %4 = vector.load %arg3[%c0_2, %c0_3] : memref<8x1xi32, #tpu.memory_space<vmem>>, vector<8x1xi32>
    %cst = arith.constant dense<0xFF800000> : vector<8xf32>
    %5 = vector.multi_reduction <maximumf>, %3, %cst [1] : vector<8x32xf32> to vector<8xf32>
    %6 = vector.shape_cast %5 : vector<8xf32> to vector<8x1xf32>
    %7 = vector.broadcast %6 : vector<8x1xf32> to vector<8x32xf32>
    %8 = arith.subf %3, %7 : vector<8x32xf32>
    %9 = math.exp %8 : vector<8x32xf32>
    %cst_4 = arith.constant dense<0.000000e+00> : vector<8xf32>
    %10 = vector.multi_reduction <add>, %9, %cst_4 [1] : vector<8x32xf32> to vector<8xf32>
    %11 = vector.shape_cast %10 : vector<8xf32> to vector<8x1xf32>
    %12 = math.log %11 : vector<8x1xf32>
    %13 = tpu.iota {dimensions = array<i32: 1>} : vector<1x32xi32>
    %14 = vector.broadcast %13 : vector<1x32xi32> to vector<8x32xi32>
    %15 = vector.broadcast %4 : vector<8x1xi32> to vector<8x32xi32>
    %16 = arith.cmpi eq, %14, %15 : vector<8x32xi32>
    %cst_5 = arith.constant 0.000000e+00 : f32
    %17 = vector.broadcast %cst_5 : f32 to vector<8x32xf32>
    %18 = arith.select %16, %8, %17 : vector<8x32xi1>, vector<8x32xf32>
    %cst_6 = arith.constant dense<0.000000e+00> : vector<8xf32>
    %19 = vector.multi_reduction <add>, %18, %cst_6 [1] : vector<8x32xf32> to vector<8xf32>
    %20 = vector.shape_cast %19 : vector<8xf32> to vector<8x1xf32>
    %c1_i32 = arith.constant 1 : i32
    %21 = arith.muli %arg0, %c1_i32 : i32
    %22 = arith.addi %21, %arg1 : i32
    %c8_i32 = arith.constant 8 : i32
    %23 = arith.muli %22, %c8_i32 : i32
    %24 = tpu.iota {dimensions = array<i32: 0>} : vector<8x1xi32>
    %25 = vector.broadcast %23 : i32 to vector<8x1xi32>
    %26 = arith.addi %25, %24 : vector<8x1xi32>
    %c8_i32_7 = arith.constant 8 : i32
    %27 = vector.broadcast %c8_i32_7 : i32 to vector<8x1xi32>
    %28 = arith.cmpi slt, %26, %27 : vector<8x1xi32>
    %c0_8 = arith.constant 0 : index
    %c0_9 = arith.constant 0 : index
    %29 = vector.load %arg5[%c0_8, %c0_9] : memref<8x1xf32, #tpu.memory_space<vmem>>, vector<8x1xf32>
    %30 = arith.subf %12, %20 : vector<8x1xf32>
    %cst_10 = arith.constant 0.000000e+00 : f32
    %31 = vector.broadcast %cst_10 : f32 to vector<8x1xf32>
    %32 = arith.select %28, %30, %31 : vector<8x1xi1>, vector<8x1xf32>
    %33 = arith.addf %29, %32 : vector<8x1xf32>
    %c0_11 = arith.constant 0 : index
    %c0_12 = arith.constant 0 : index
    %34 = vector.load %arg5[%c0_11, %c0_12] : memref<8x1xf32, #tpu.memory_space<vmem>>, vector<8x1xf32>
    tpu.vector_store %arg5[%c0_11, %c0_12], %33 {strides = array<i32>} : memref<8x1xf32, #tpu.memory_space<vmem>>, vector<8x1xf32>,
    %c0_i32_13 = arith.constant 0 : i32
    %35 = arith.cmpi eq, %arg1, %c0_i32_13 : i32
    %36 = arith.extui %35 : i1 to i32
    %c0_i32_14 = arith.constant 0 : i32
    %37 = arith.cmpi ne, %36, %c0_i32_14 : i32
    scf.if %37 {
      %c0_15 = arith.constant 0 : index
      %c0_16 = arith.constant 0 : index
      %38 = vector.load %arg5[%c0_15, %c0_16] : memref<8x1xf32, #tpu.memory_space<vmem>>, vector<8x1xf32>
      %39 = vector.shape_cast %38 : vector<8x1xf32> to vector<1x8x1xf32>
      %cst_17 = arith.constant dense<0.000000e+00> : vector<1xf32>
      %40 = vector.multi_reduction <add>, %39, %cst_17 [1, 2] : vector<1x8x1xf32> to vector<1xf32>
      %41 = vector.shape_cast %40 : vector<1xf32> to vector<1x1x1xf32>
      %42 = vector.extract %41[0, 0, 0] : f32 from vector<1x1x1xf32>
      %cst_18 = arith.constant 1.250000e-01 : f32
      %43 = arith.mulf %42, %cst_18 : f32
      %44 = tpu.iota {dimensions = array<i32: 0>} : vector<8x128xi32>
      %45 = tpu.iota {dimensions = array<i32: 1>} : vector<8x128xi32>
      %c0_i32_19 = arith.constant 0 : i32
      %46 = vector.broadcast %c0_i32_19 : i32 to vector<8x128xi32>
      %47 = arith.cmpi eq, %44, %46 : vector<8x128xi32>
      %c0_i32_20 = arith.constant 0 : i32
      %48 = vector.broadcast %c0_i32_20 : i32 to vector<8x128xi32>
      %49 = arith.cmpi eq, %45, %48 : vector<8x128xi32>
      %50 = arith.andi %47, %49 : vector<8x128xi1>
      %cst_21 = arith.constant 0.000000e+00 : f32
      %51 = vector.broadcast %43 : f32 to vector<8x128xf32>
      %52 = vector.broadcast %cst_21 : f32 to vector<8x128xf32>
      %53 = arith.select %50, %51, %52 : vector<8x128xi1>, vector<8x128xf32>
      %c0_22 = arith.constant 0 : index
      %c0_23 = arith.constant 0 : index
      %54 = vector.load %arg4[%c0_22, %c0_23] : memref<8x128xf32, #tpu.memory_space<vmem>>, vector<8x128xf32>
      tpu.vector_store %arg4[%c0_22, %c0_23], %53 {strides = array<i32>} : memref<8x128xf32, #tpu.memory_space<vmem>>, vector<8x128xf32>,
    } else {
    }
    return
  }
  func.func @transform_0(%arg0: i32, %arg1: i32) -> (i32, i32) {
    %c1_i32 = arith.constant 1 : i32
    %0 = arith.muli %arg0, %c1_i32 : i32
    %1 = arith.addi %0, %arg1 : i32
    %c0_i32 = arith.constant 0 : i32
    %2 = arith.minsi %1, %c0_i32 : i32
    %c0_i32_0 = arith.constant 0 : i32
    %c0_i32_1 = arith.constant 0 : i32
    return %2, %c0_i32_0 : i32, i32
  }
  func.func @transform_1(%arg0: i32, %arg1: i32) -> (i32, i32) {
    %c1_i32 = arith.constant 1 : i32
    %0 = arith.muli %arg0, %c1_i32 : i32
    %1 = arith.addi %0, %arg1 : i32
    %c0_i32 = arith.constant 0 : i32
    %2 = arith.minsi %1, %c0_i32 : i32
    %c0_i32_0 = arith.constant 0 : i32
    %c0_i32_1 = arith.constant 0 : i32
    return %2, %c0_i32_0 : i32, i32
  }
  func.func @transform_2(%arg0: i32, %arg1: i32) -> (i32, i32) {
    %c0_i32 = arith.constant 0 : i32
    %c0_i32_0 = arith.constant 0 : i32
    return %arg0, %c0_i32 : i32, i32
  }
}

</mosaic_0001>

<llo_original>
// kernel: tpu_custom_call.1
$region0: #{tpu_custom_call.1}
  #allocation0 [shape = 'u32[]', space=smem, size = 0x4, offset = 0x4, fixed_abs, tag = 'smem constant byte address 0x4 - core index']
  #allocation1 [shape = 'u32[72,128]{1,0:T(1,128)}', space=vmem, size = 0x9000, scoped, tag = 'internal scratch']
  #allocation2 [shape = 'f32[8,1]{1,0:T(8,128)}', space=vmem, size = 0x1000, scoped, tag = 'scratch operand']
  %s0 = inlined_call_operand.vmem [shape: f32[8,32], index: 0, kind: input, shape index: {}]
  %s1 = inlined_call_operand.vmem [shape: s32[8,1], index: 1, kind: input, shape index: {}]
  %s2 = inlined_call_operand.hbm [shape: f32[8,128], index: 2, kind: output, shape index: {}]
  %s3 = sld [smem:[#allocation0]]
  $region26: #{tpu_custom_call.1} parent=0
    _
  %s5 = ssub.s32 1, %s3
  %s6 = scalar_select 0, %s5, %s3
  $region1: #{tpu_custom_call.1} parent=0
    #allocation3 [shape = 'u8[4096]{0}', space=vmem, size = 0x1000, scoped, tag = 'output window, operand 0, single buffered']
    #allocation4 [shape = 's32[1]{0}', space=sflag, size = 0x4, scoped, tag = 'scoped memory for tpu_custom_call.1']
    %7 = vsyncpa [#allocation4], 0
    // Predicated region
    $region2: #{tpu_custom_call.1} parent=1 // pred_check
      _
    $region3: #{tpu_custom_call.1} parent=1 // pred_check_branch
      %9 = sbr.rel (0) target = $region5
    $region4: #{tpu_custom_call.1} parent=1 // pred_region
      %s10 = sadd.s32 0, 0
      %p11 = scmp.lt.s32.totalorder %s10, 0
      %s12 = scalar_select %p11, %s10, 0
      %p13 = scmp.lt.s32.totalorder %s12, 0
      %s14 = scalar_select %p13, %s12, 0
      %s15 = smul.addr %s14, 8
      %s16 = scalar_lea.vmem %s0, %s15
      %s17 = sadd.s32 0, 0
      %p18 = scmp.lt.s32.totalorder %s17, 0
      %s19 = scalar_select %p18, %s17, 0
    $region5: #{tpu_custom_call.1} parent=1 // pred_fallthru
      _
    // Predicated region
    $region6: #{tpu_custom_call.1} parent=1 // pred_check
      _
    $region7: #{tpu_custom_call.1} parent=1 // pred_check_branch
      %21 = sbr.rel (0) target = $region9
    $region8: #{tpu_custom_call.1} parent=1 // pred_region
      %s22 = sadd.s32 0, 0
      %p23 = scmp.lt.s32.totalorder %s22, 0
      %s24 = scalar_select %p23, %s22, 0
      %p25 = scmp.lt.s32.totalorder %s24, 0
      %s26 = scalar_select %p25, %s24, 0
      %s27 = smul.addr %s26, 8
      %s28 = scalar_lea.vmem %s1, %s27
      %s29 = sadd.s32 0, 0
      %p30 = scmp.lt.s32.totalorder %s29, 0
      %s31 = scalar_select %p30, %s29, 0
    $region9: #{tpu_custom_call.1} parent=1 // pred_fallthru
      _
    %s32 = sadd.s32 0, 0
    %p33 = scmp.lt.s32.totalorder %s32, 0
    %s34 = scalar_select %p33, %s32, 0
    %p35 = scmp.lt.s32.totalorder %s34, 0
    %s36 = scalar_select %p35, %s34, 0
    %s37 = smul.addr %s36, 8
    %s38 = scalar_lea.vmem %s0, %s37
    %s39 = sadd.s32 0, 0
    %p40 = scmp.lt.s32.totalorder %s39, 0
    %s41 = scalar_select %p40, %s39, 0
    %p42 = scmp.lt.s32.totalorder %s41, 0
    %s43 = scalar_select %p42, %s41, 0
    %s44 = smul.addr %s43, 8
    %s45 = scalar_lea.vmem %s1, %s44
    %s46 = sadd.s32 0, 0
    %p47 = scmp.lt.s32.totalorder %s46, 0
    %s48 = scalar_select %p47, %s46, 0
    %p49 = scmp.lt.s32.totalorder %s48, 0
    %s50 = scalar_select %p49, %s48, 0
    %s51 = smul.addr %s50, 8
    %s52 = scalar_lea.vmem %s0, %s51
    %s53 = sadd.s32 0, 0
    %p54 = scmp.lt.s32.totalorder %s53, 0
    %s55 = scalar_select %p54, %s53, 0
    %s56 = sadd.s32 0, 0
    %p57 = scmp.lt.s32.totalorder %s56, 0
    %s58 = scalar_select %p57, %s56, 0
    %p59 = scmp.lt.s32.totalorder %s58, 0
    %s60 = scalar_select %p59, %s58, 0
    %s61 = smul.addr %s60, 8
    %s62 = scalar_lea.vmem %s1, %s61
    %s63 = sadd.s32 0, 0
    %p64 = scmp.lt.s32.totalorder %s63, 0
    %s65 = scalar_select %p64, %s63, 0
    %p66 = scmp.eq.s32.totalorder 0, 0
    // Predicated region
    $region10: #{tpu_custom_call.1} parent=1 // pred_check
      %p67 = pneg %p66
    $region11: #{tpu_custom_call.1} parent=1 // pred_check_branch
      %69 = sbr.rel (%p67) target = $region13
    $region12: #{tpu_custom_call.1} parent=1 // pred_region
      %vm70 = vcmask 7168
      %71 = vst.msk [vmem:[#allocation2] sm:$0xff] %vm70, 0.0
    $region13: #{tpu_custom_call.1} parent=1 // pred_fallthru
      _
    %v72 = vld [vmem:[%s52] sm:$0xff]
    %v73 = vld [vmem:[%s62] sm:$0xff]
    %vm74 = vcmask 261120
    %v75 = vsel %vm74, %v72, -inf
    %76 = vmax.xlane.f32.xlu0 %v75
    %v77 = vpop.xlane.xlu0 %76
    %v78 = vsub.f32 %v72, %v77
    %v79 = vmul.f32 %v78, 1.442695
    %v80 = vpow.pop %v79
    %v81 = vsel %vm74, %v80, 0.0
    %82 = vadd.xlane.f32.xlu0 %v81
    %v83 = vpop.xlane.xlu0 %82
    %v84 = vlog2.pop %v83
    %v85 = vmul.f32 %v84, 0.6931472
    %v86 = vlaneseq
    %v87 = vand.u32 %v86, 127
    %88 = vset.pattern.permute.xlu0 0
    %89 = vperm.xlu0 %88, %v73
    %v90 = vpop.permute.xlu0 %89
    %vm91 = vcmp.eq.s32.totalorder %v87, %v90
    %v92 = vsel %vm91, %v78, 0.0
    %v93 = vsel %vm74, %v92, 0.0
    %94 = vadd.xlane.f32.xlu0 %v93
    %v95 = vpop.xlane.xlu0 %94
    %s96 = sadd.s32 0, 0
    %s97 = smul.u32 %s96, 8
    %v98 = vlaneseq
    %v99 = vshrl.u32 %v98, 7
    %v100 = vstv %s97
    %v101 = vadd.s32 %v100, %v99
    %vm102 = vcmp.lt.s32.totalorder %v101, 8
    %v103 = vld [vmem:[#allocation2] sm:$0xff]
    %v104 = vsub.f32 %v85, %v95
    %v105 = vsel %vm102, %v104, 0.0
    %v106 = vadd.f32 %v103, %v105
    %vm107 = vcmask 7168
    %108 = vst.msk [vmem:[#allocation2] sm:$0xff] %vm107, %v106
    // Predicated region
    $region14: #{tpu_custom_call.1} parent=1 // pred_check
      %p109 = pneg %p66
    $region15: #{tpu_custom_call.1} parent=1 // pred_check_branch
      %111 = sbr.rel (%p109) target = $region17
    $region16: #{tpu_custom_call.1} parent=1 // pred_region
      %v112 = vld [vmem:[#allocation2] sm:$0xff]
      %v113 = vsel %vm107, %v112, 0.0
      %114 = vadd.xlane.f32.xlu0 %v113
      %v115 = vpop.xlane.xlu0 %114
      %v116 = vrot.slane %v115, 4
      %v117 = vadd.f32 %v115, %v116
      %v118 = vrot.slane %v117, 2
      %v119 = vadd.f32 %v117, %v118
      %v120 = vrot.slane %v119, 1
      %v121 = vadd.f32 %v119, %v120
      %s122 = vtos %v121
      %s123 = smul.f32 %s122, 0.125
      %vm124 = vcmp.eq.s32.totalorder %v99, 0
      %vm125 = vcmp.eq.s32.totalorder %v87, 0
      %vm126 = vmand %vm124, %vm125
      %v127 = vstv %s123
      %v128 = vsel %vm126, %v127, 0.0
      %129 = vst [vmem:[#allocation3] sm:$0xff] %v128
    $region17: #{tpu_custom_call.1} parent=1 // pred_fallthru
      _
    // Predicated region
    $region18: #{tpu_custom_call.1} parent=1 // pred_check
      _
    $region19: #{tpu_custom_call.1} parent=1 // pred_check_branch
      %131 = sbr.rel (0) target = $region21
    $region20: #{tpu_custom_call.1} parent=1 // pred_region
      %133 = vsyncadd [#allocation4], 0
      %s135 = sshll.u32 [#allocation3], 4
      %s136 = int_to_ptr.vmem [resolvable:$true] %s135
      %s137 = sshll.u32 %s2, 4
      %s138 = int_to_ptr.hbm [resolvable:$true] %s137
      %140 = dma.vmem_to_hbm [thread:$0]  %s136, 128, %s138, [#allocation4]
    $region21: #{tpu_custom_call.1} parent=1 // pred_fallthru
      _
    // Predicated region
    $region22: #{tpu_custom_call.1} parent=1 // pred_check
      _
    $region23: #{tpu_custom_call.1} parent=1 // pred_check_branch
      %142 = sbr.rel (0) target = $region25
    $region24: #{tpu_custom_call.1} parent=1 // pred_region
      %144 = dma.done [#allocation4], 128
    $region25: #{tpu_custom_call.1} parent=1 // pred_fallthru
      _
    %145 = vsyncpa [#allocation4], 1

</llo_original>
